<compile_context>
chip_gen: v7x
topology: tpu7x:2x2x1
jax: 0.10.0
libtpu: 0.0.40
codegen_flags: <defaults>
</compile_context>

<pallas_src>
import functools
import math

import jax
import jax.numpy as jnp
from jax.experimental import pallas as pl
from jax.experimental.pallas import tpu as pltpu


LANE = 128


def _round_up(x, m):
    return ((x + m - 1) // m) * m


def gcn_kernel(feat_ref, w_ref, adj_ref, b_ref, out_ref, *, activation, d3):
    """Single-step kernel: the whole (small) problem lives in VMEM.

    feat_ref : (B, N, Fin) f32
    w_ref    : (Fin, DP)   f32  weight zero-padded to DP = round_up(Fout, 128)
    adj_ref  : (Ba, N, N)  f32  Ba == 1 (shared adj, torch broadcast) or Ba == B
    b_ref    : (1, DP)     f32  bias zero-padded
    out_ref  : (B, N, DP)
    """
    B, N, Fin = feat_ref.shape
    DP = w_ref.shape[1]
    Ba = adj_ref.shape[0]

    # One lane-dense feature transform for the whole batch:
    # (B*N, Fin) @ (Fin, DP) -> (B*N, DP).  Single MXU stream, f32 accumulate.
    feat2d = feat_ref[...].reshape(B * N, Fin)
    h = jnp.dot(feat2d, w_ref[...], preferred_element_type=jnp.float32)

    bias = b_ref[...]                                        # (1, DP), row broadcast
    lane = jax.lax.broadcasted_iota(jnp.int32, (N, DP), dimension=1)
    prop_mask = lane < d3                                    # first third: adj-propagated

    # Per-batch graph propagation.  B is small and static here; the slices of h
    # are static sublane slices (zero cost) and the lane select is pure VPU.
    # TODO(synk): for large N, tile the adj contraction over node blocks with a
    # trailing "arbitrary" reduction grid axis + VMEM accumulator (v7x 64 MiB VMEM).
    for b in range(B):
        hb = h[b * N:(b + 1) * N, :]                         # (N, DP)
        a_b = adj_ref[b if Ba > 1 else 0]                    # (N, N)
        ob = jnp.dot(a_b, hb, preferred_element_type=jnp.float32)
        mixed = jnp.where(prop_mask, ob, hb) + bias
        out_ref[b] = activation(mixed).astype(out_ref.dtype)


def prepare_gcn_params(weight1, bias):
    """One-time parameter preprocessing (hoisted out of the forward path).

    Returns the lane-padded weight (Fin, DP), padded bias (1, DP) and the
    true Fout (static Python int).
    """
    w = weight1.reshape(weight1.shape[-2], weight1.shape[-1])   # (Fin, Fout)
    fin, fout = int(w.shape[0]), int(w.shape[1])
    dp = _round_up(max(fout, 1), LANE)
    w_pad = jnp.pad(w, ((0, 0), (0, dp - fout)))
    b_pad = jnp.pad(bias, (0, dp - fout)).reshape(1, dp)
    return w_pad, b_pad, fout


def gcn_layer_forward(features, adj, w_pad, b_pad, *, fout, activation=jax.nn.relu):
    """features: (B, N, Fin) f32; adj: (N, N) or (B, N, N); w_pad/b_pad from
    prepare_gcn_params; fout: true output width; activation: elementwise fn."""
    B, N, Fin = features.shape
    DP = w_pad.shape[1]
    d3 = fout // 3

    # adj may be shared across batch (torch broadcasting of a 2-D adj) or
    # provided per-batch as (B, N, N).
    adj3 = adj[None] if adj.ndim == 2 else adj
    Ba = adj3.shape[0]

    flops = 2 * B * N * Fin * DP + 2 * B * N * N * DP
    io_bytes = 4 * (features.size + w_pad.size + adj3.size + b_pad.size + B * N * DP)
    cost = pl.CostEstimate(flops=flops, transcendentals=0, bytes_accessed=io_bytes)

    # Honest VMEM budget: everything here is tiny; keep a few MiB of headroom.
    vmem_bytes = int(min(64 * 1024 * 1024,
                         max(4 * 1024 * 1024, 2 * io_bytes + (2 << 20))))

    out = pl.pallas_call(
        functools.partial(gcn_kernel, activation=activation, d3=d3),
        out_shape=jax.ShapeDtypeStruct((B, N, DP), features.dtype),
        grid_spec=pltpu.PrefetchScalarGridSpec(
            num_scalar_prefetch=0,
            grid=(1,),                                     # single step: batch fused
            in_specs=[
                pl.BlockSpec((B, N, Fin), lambda i: (0, 0, 0)),   # features (whole batch)
                pl.BlockSpec((Fin, DP), lambda i: (0, 0)),        # padded weight (constant)
                pl.BlockSpec((Ba, N, N), lambda i: (0, 0, 0)),    # adjacency
                pl.BlockSpec((1, DP), lambda i: (0, 0)),          # padded bias (constant)
            ],
            out_specs=pl.BlockSpec((B, N, DP), lambda i: (0, 0, 0)),
        ),
        compiler_params=pltpu.CompilerParams(
            dimension_semantics=("arbitrary",),
            vmem_limit_bytes=vmem_bytes,
        ),
        cost_estimate=cost,
    )(features, w_pad, adj3, b_pad)

    # Trim the padded lanes once, outside the kernel (plain slice, no concat).
    return out[..., :fout]


def reference_forward(features, adj, weight1, bias, activation=jax.nn.relu):
    w = weight1.reshape(weight1.shape[-2], weight1.shape[-1])
    h = jnp.einsum("bnf,fo->bno", features, w)
    d3 = h.shape[-1] // 3
    if adj.ndim == 2:
        o1 = jnp.einsum("nm,bmd->bnd", adj, h[:, :, :d3])
    else:
        o1 = jnp.einsum("bnm,bmd->bnd", adj, h[:, :, :d3])
    out = jnp.concatenate([o1, h[:, :, d3:]], axis=-1) + bias
    return activation(out)


if __name__ == "__main__":
    # Small shapes consistent with the module: B=2 graphs, N=16 nodes,
    # in_features=32, out_features=48 (divisible by 3, as the forward implies).
    B, N, Fin, Fout = 2, 16, 32, 48

    key = jax.random.PRNGKey(0)
    k_feat, k_adj, k_w, k_b = jax.random.split(key, 4)

    features = jax.random.normal(k_feat, (B, N, Fin), dtype=jnp.float32)
    # Symmetric row-normalized adjacency-like matrix (shared over batch,
    # matching torch.matmul broadcasting of a 2-D adj).
    a = jax.random.uniform(k_adj, (N, N), dtype=jnp.float32)
    adj = (a + a.T) * 0.5
    adj = adj / jnp.sum(adj, axis=-1, keepdims=True)

    # Deterministic parameter init mirroring reset_parameters():
    # stdv = 6 / sqrt(in_features + 1) * 0.3, weight ~ U(-stdv, stdv), bias ~ U(-0.1, 0.1)
    stdv = 6.0 / math.sqrt(Fin + 1) * 0.3
    weight1 = jax.random.uniform(k_w, (1, Fin, Fout), dtype=jnp.float32,
                                 minval=-stdv, maxval=stdv)
    bias = jax.random.uniform(k_b, (Fout,), dtype=jnp.float32,
                              minval=-0.1, maxval=0.1)

    # One-time parameter preprocessing (padding hoisted out of the call path).
    w_pad, b_pad, fout = prepare_gcn_params(weight1, bias)

    forward = jax.jit(functools.partial(gcn_layer_forward, fout=fout,
                                        activation=jax.nn.relu))
    out = jax.block_until_ready(forward(features, adj, w_pad, b_pad))

    ref = reference_forward(features, adj, weight1, bias, activation=jax.nn.relu)
    assert out.shape == (B, N, Fout)
    assert jnp.allclose(out, ref, atol=1e-5, rtol=1e-5), "mismatch vs reference"

    print("KERNEL_OK")
</pallas_src>

<mosaic_0001>
module attributes {stable_mosaic.version = 11 : i64} {
  func.func @gcn_kernel(%arg0: i32, %arg1: memref<2x16x32xf32, #tpu.memory_space<vmem>>, %arg2: memref<32x128xf32, #tpu.memory_space<vmem>>, %arg3: memref<1x16x16xf32, #tpu.memory_space<vmem>>, %arg4: memref<1x128xf32, #tpu.memory_space<vmem>>, %arg5: memref<2x16x128xf32, #tpu.memory_space<vmem>>) attributes {dimension_semantics = [#tpu.dimension_semantics<arbitrary>], iteration_bounds = array<i64: 1>, scalar_prefetch = 0 : i64, scratch_operands = 0 : i64, tpu.core_type = #tpu.core_type<tc>, window_params = [{pipeline_mode = #tpu.pipeline_mode<synchronous>, transform_indices = @transform_0, window_bounds = array<i64: 2, 16, 32>}, {pipeline_mode = #tpu.pipeline_mode<synchronous>, transform_indices = @transform_1, window_bounds = array<i64: 32, 128>}, {pipeline_mode = #tpu.pipeline_mode<synchronous>, transform_indices = @transform_2, window_bounds = array<i64: 1, 16, 16>}, {pipeline_mode = #tpu.pipeline_mode<synchronous>, transform_indices = @transform_3, window_bounds = array<i64: 1, 128>}, {pipeline_mode = #tpu.pipeline_mode<synchronous>, transform_indices = @transform_4, window_bounds = array<i64: 2, 16, 128>}]} {
    %c0 = arith.constant 0 : index
    %c0_0 = arith.constant 0 : index
    %c0_1 = arith.constant 0 : index
    %0 = vector.load %arg1[%c0, %c0_0, %c0_1] : memref<2x16x32xf32, #tpu.memory_space<vmem>>, vector<2x16x32xf32>
    %1 = vector.shape_cast %0 : vector<2x16x32xf32> to vector<32x32xf32>
    %c0_2 = arith.constant 0 : index
    %c0_3 = arith.constant 0 : index
    %2 = vector.load %arg2[%c0_2, %c0_3] : memref<32x128xf32, #tpu.memory_space<vmem>>, vector<32x128xf32>
    %cst = arith.constant dense<0.000000e+00> : vector<32x128xf32>
    %3 = tpu.matmul %1, %2, %cst {dimension_numbers = #tpu.dot_dimension_numbers<[1], [0], [0], [1], [0, 0, 1, 1], [], []>} : vector<32x32xf32>, vector<32x128xf32>, vector<32x128xf32> -> vector<32x128xf32>
    %c0_4 = arith.constant 0 : index
    %c0_5 = arith.constant 0 : index
    %4 = vector.load %arg4[%c0_4, %c0_5] : memref<1x128xf32, #tpu.memory_space<vmem>>, vector<1x128xf32>
    %5 = tpu.iota {dimensions = array<i32: 1>} : vector<16x128xi32>
    %c16_i32 = arith.constant 16 : i32
    %6 = vector.broadcast %c16_i32 : i32 to vector<16x128xi32>
    %7 = arith.cmpi slt, %5, %6 : vector<16x128xi32>
    %8 = vector.extract_strided_slice %3 {offsets = [0, 0], sizes = [16, 128], strides = [1, 1]} : vector<32x128xf32> to vector<16x128xf32>
    %c0_6 = arith.constant 0 : index
    %c0_7 = arith.constant 0 : index
    %c0_8 = arith.constant 0 : index
    %9 = vector.load %arg3[%c0_6, %c0_7, %c0_8] : memref<1x16x16xf32, #tpu.memory_space<vmem>>, vector<1x16x16xf32>
    %10 = vector.shape_cast %9 : vector<1x16x16xf32> to vector<16x16xf32>
    %cst_9 = arith.constant dense<0.000000e+00> : vector<16x128xf32>
    %11 = tpu.matmul %10, %8, %cst_9 {dimension_numbers = #tpu.dot_dimension_numbers<[1], [0], [0], [1], [0, 0, 1, 1], [], []>} : vector<16x16xf32>, vector<16x128xf32>, vector<16x128xf32> -> vector<16x128xf32>
    %12 = arith.select %7, %11, %8 : vector<16x128xi1>, vector<16x128xf32>
    %13 = vector.broadcast %4 : vector<1x128xf32> to vector<16x128xf32>
    %14 = arith.addf %12, %13 : vector<16x128xf32>
    %cst_10 = arith.constant 0.000000e+00 : f32
    %15 = vector.broadcast %cst_10 : f32 to vector<16x128xf32>
    %16 = arith.maximumf %14, %15 : vector<16x128xf32>
    %c0_11 = arith.constant 0 : index
    %c0_12 = arith.constant 0 : index
    %c0_13 = arith.constant 0 : index
    %17 = vector.load %arg5[%c0_11, %c0_12, %c0_13] : memref<2x16x128xf32, #tpu.memory_space<vmem>>, vector<1x16x128xf32>
    %18 = vector.shape_cast %17 : vector<1x16x128xf32> to vector<16x128xf32>
    %19 = vector.shape_cast %16 : vector<16x128xf32> to vector<1x16x128xf32>
    tpu.vector_store %arg5[%c0_11, %c0_12, %c0_13], %19 {strides = array<i32>} : memref<2x16x128xf32, #tpu.memory_space<vmem>>, vector<1x16x128xf32>,
    %20 = vector.extract_strided_slice %3 {offsets = [16, 0], sizes = [16, 128], strides = [1, 1]} : vector<32x128xf32> to vector<16x128xf32>
    %c0_14 = arith.constant 0 : index
    %c0_15 = arith.constant 0 : index
    %c0_16 = arith.constant 0 : index
    %21 = vector.load %arg3[%c0_14, %c0_15, %c0_16] : memref<1x16x16xf32, #tpu.memory_space<vmem>>, vector<1x16x16xf32>
    %22 = vector.shape_cast %21 : vector<1x16x16xf32> to vector<16x16xf32>
    %cst_17 = arith.constant dense<0.000000e+00> : vector<16x128xf32>
    %23 = tpu.matmul %22, %20, %cst_17 {dimension_numbers = #tpu.dot_dimension_numbers<[1], [0], [0], [1], [0, 0, 1, 1], [], []>} : vector<16x16xf32>, vector<16x128xf32>, vector<16x128xf32> -> vector<16x128xf32>
    %24 = arith.select %7, %23, %20 : vector<16x128xi1>, vector<16x128xf32>
    %25 = vector.broadcast %4 : vector<1x128xf32> to vector<16x128xf32>
    %26 = arith.addf %24, %25 : vector<16x128xf32>
    %cst_18 = arith.constant 0.000000e+00 : f32
    %27 = vector.broadcast %cst_18 : f32 to vector<16x128xf32>
    %28 = arith.maximumf %26, %27 : vector<16x128xf32>
    %c1 = arith.constant 1 : index
    %c0_19 = arith.constant 0 : index
    %c0_20 = arith.constant 0 : index
    %29 = vector.load %arg5[%c1, %c0_19, %c0_20] : memref<2x16x128xf32, #tpu.memory_space<vmem>>, vector<1x16x128xf32>
    %30 = vector.shape_cast %29 : vector<1x16x128xf32> to vector<16x128xf32>
    %31 = vector.shape_cast %28 : vector<16x128xf32> to vector<1x16x128xf32>
    tpu.vector_store %arg5[%c1, %c0_19, %c0_20], %31 {strides = array<i32>} : memref<2x16x128xf32, #tpu.memory_space<vmem>>, vector<1x16x128xf32>,
    return
  }
  func.func @transform_0(%arg0: i32) -> (i32, i32, i32) {
    %c0_i32 = arith.constant 0 : i32
    %c0_i32_0 = arith.constant 0 : i32
    %c0_i32_1 = arith.constant 0 : i32
    %c0_i32_2 = arith.constant 0 : i32
    return %c0_i32, %c0_i32_0, %c0_i32_1 : i32, i32, i32
  }
  func.func @transform_1(%arg0: i32) -> (i32, i32) {
    %c0_i32 = arith.constant 0 : i32
    %c0_i32_0 = arith.constant 0 : i32
    %c0_i32_1 = arith.constant 0 : i32
    return %c0_i32, %c0_i32_0 : i32, i32
  }
  func.func @transform_2(%arg0: i32) -> (i32, i32, i32) {
    %c0_i32 = arith.constant 0 : i32
    %c0_i32_0 = arith.constant 0 : i32
    %c0_i32_1 = arith.constant 0 : i32
    %c0_i32_2 = arith.constant 0 : i32
    return %c0_i32, %c0_i32_0, %c0_i32_1 : i32, i32, i32
  }
  func.func @transform_3(%arg0: i32) -> (i32, i32) {
    %c0_i32 = arith.constant 0 : i32
    %c0_i32_0 = arith.constant 0 : i32
    %c0_i32_1 = arith.constant 0 : i32
    return %c0_i32, %c0_i32_0 : i32, i32
  }
  func.func @transform_4(%arg0: i32) -> (i32, i32, i32) {
    %c0_i32 = arith.constant 0 : i32
    %c0_i32_0 = arith.constant 0 : i32
    %c0_i32_1 = arith.constant 0 : i32
    %c0_i32_2 = arith.constant 0 : i32
    return %c0_i32, %c0_i32_0, %c0_i32_1 : i32, i32, i32
  }
}

</mosaic_0001>

<llo_original>
// kernel: gcn_layer_forward.1
$region0: #{gcn_layer_forward.1}
  #allocation0 [shape = 'u32[]', space=smem, size = 0x4, offset = 0x4, fixed_abs, tag = 'smem constant byte address 0x4 - core index']
  #allocation1 [shape = 'u32[144,128]{1,0:T(1,128)}', space=vmem, size = 0x12000, scoped, tag = 'internal scratch']
  %s0 = inlined_call_operand.hbm [shape: f32[2,16,32], index: 0, kind: input, shape index: {}]
  %s1 = inlined_call_operand.hbm [shape: f32[32,128], index: 1, kind: input, shape index: {}]
  %s2 = inlined_call_operand.hbm [shape: f32[1,16,16], index: 2, kind: input, shape index: {}]
  %s3 = inlined_call_operand.vmem [shape: f32[1,128], index: 3, kind: input, shape index: {}]
  %s4 = inlined_call_operand.hbm [shape: f32[2,16,128], index: 4, kind: output, shape index: {}]
  %s5 = sld [smem:[#allocation0]]
  $region38: #{gcn_layer_forward.1} parent=0
    _
  %s7 = ssub.s32 1, %s5
  %s8 = scalar_select 0, %s7, %s5
  $region1: #{gcn_layer_forward.1} parent=0
    #allocation2 [shape = 'u8[16384]{0}', space=vmem, size = 0x4000, scoped, tag = 'input window, operand 0, single buffered']
    #allocation3 [shape = 's32[1]{0}', space=sflag, size = 0x4, scoped, tag = 'scoped memory for gcn_layer_forward.1']
    #allocation4 [shape = 's32[1]{0}', space=sflag, size = 0x4, scoped, tag = 'scoped memory for gcn_layer_forward.1']
    #allocation5 [shape = 'u8[16384]{0}', space=vmem, size = 0x4000, scoped, tag = 'input window, operand 1, single buffered']
    #allocation6 [shape = 's32[1]{0}', space=sflag, size = 0x4, scoped, tag = 'scoped memory for gcn_layer_forward.1']
    #allocation7 [shape = 'u8[8192]{0}', space=vmem, size = 0x2000, scoped, tag = 'input window, operand 2, single buffered']
    #allocation8 [shape = 'u8[16384]{0}', space=vmem, size = 0x4000, scoped, tag = 'output window, operand 0, single buffered']
    %9 = vsyncpa [#allocation3], 0
    %10 = vsyncpa [#allocation6], 0
    %11 = vsyncpa [#allocation4], 0
    // Predicated region
    $region2: #{gcn_layer_forward.1} parent=1 // pred_check
      _
    $region3: #{gcn_layer_forward.1} parent=1 // pred_check_branch
      %13 = sbr.rel (0) target = $region5
    $region4: #{gcn_layer_forward.1} parent=1 // pred_region
      %s15 = ssub.s32 512, 512
      %16 = vsyncadd [#allocation3], %s15
      %s17 = sshll.u32 [#allocation2], 4
      %s18 = int_to_ptr.vmem [resolvable:$true] %s17
      %23 = dma.hbm_to_vmem [thread:$0]  %s0, 512, %s18, [#allocation3], 128, 128, 8
    $region5: #{gcn_layer_forward.1} parent=1 // pred_fallthru
      _
    // Predicated region
    $region6: #{gcn_layer_forward.1} parent=1 // pred_check
      _
    $region7: #{gcn_layer_forward.1} parent=1 // pred_check_branch
      %25 = sbr.rel (0) target = $region9
    $region8: #{gcn_layer_forward.1} parent=1 // pred_region
      %s27 = ssub.s32 512, 512
      %28 = vsyncadd [#allocation6], %s27
      %s29 = sshll.u32 [#allocation5], 4
      %s30 = int_to_ptr.vmem [resolvable:$true] %s29
      %35 = dma.hbm_to_vmem [thread:$0]  %s1, 512, %s30, [#allocation6], 128, 128, 8
    $region9: #{gcn_layer_forward.1} parent=1 // pred_fallthru
      _
    // Predicated region
    $region10: #{gcn_layer_forward.1} parent=1 // pred_check
      _
    $region11: #{gcn_layer_forward.1} parent=1 // pred_check_branch
      %37 = sbr.rel (0) target = $region13
    $region12: #{gcn_layer_forward.1} parent=1 // pred_region
      %s39 = ssub.s32 256, 256
      %40 = vsyncadd [#allocation6], %s39
      %s41 = sshll.u32 [#allocation7], 4
      %s42 = int_to_ptr.vmem [resolvable:$true] %s41
      %47 = dma.hbm_to_vmem [thread:$0]  %s2, 256, %s42, [#allocation6], 128, 128, 8
    $region13: #{gcn_layer_forward.1} parent=1 // pred_fallthru
      _
    // Predicated region
    $region14: #{gcn_layer_forward.1} parent=1 // pred_check
      _
    $region15: #{gcn_layer_forward.1} parent=1 // pred_check_branch
      %49 = sbr.rel (0) target = $region17
    $region16: #{gcn_layer_forward.1} parent=1 // pred_region
      _
    $region17: #{gcn_layer_forward.1} parent=1 // pred_fallthru
      _
    // Predicated region
    $region18: #{gcn_layer_forward.1} parent=1 // pred_check
      _
    $region19: #{gcn_layer_forward.1} parent=1 // pred_check_branch
      %51 = sbr.rel (0) target = $region21
    $region20: #{gcn_layer_forward.1} parent=1 // pred_region
      %52 = dma.done [#allocation3], 512
    $region21: #{gcn_layer_forward.1} parent=1 // pred_fallthru
      _
    // Predicated region
    $region22: #{gcn_layer_forward.1} parent=1 // pred_check
      _
    $region23: #{gcn_layer_forward.1} parent=1 // pred_check_branch
      %54 = sbr.rel (0) target = $region25
    $region24: #{gcn_layer_forward.1} parent=1 // pred_region
      %55 = dma.done [#allocation6], 512
    $region25: #{gcn_layer_forward.1} parent=1 // pred_fallthru
      _
    // Predicated region
    $region26: #{gcn_layer_forward.1} parent=1 // pred_check
      _
    $region27: #{gcn_layer_forward.1} parent=1 // pred_check_branch
      %57 = sbr.rel (0) target = $region29
    $region28: #{gcn_layer_forward.1} parent=1 // pred_region
      %58 = dma.done [#allocation6], 256
    $region29: #{gcn_layer_forward.1} parent=1 // pred_fallthru
      _
    %v59 = vld [vmem:[#allocation2] sm:$0xff]
    %v60 = vld [vmem:[#allocation2 + $0x8] sm:$0xff]
    %v61 = vld [vmem:[#allocation2 + $0x10] sm:$0xff]
    %v62 = vld [vmem:[#allocation2 + $0x18] sm:$0xff]
    %v63 = vld [vmem:[#allocation5] sm:$0xff]
    %v64 = vld [vmem:[#allocation5 + $0x8] sm:$0xff]
    %v65 = vld [vmem:[#allocation5 + $0x10] sm:$0xff]
    %v66 = vld [vmem:[#allocation5 + $0x18] sm:$0xff]
    %vm67 = vcmask 261120
    %v69 = vsel %vm67, %v59, 0
    %v72 = vsel %vm67, %v60, 0
    %v75 = vsel %vm67, %v61, 0
    %v78 = vsel %vm67, %v62, 0
    %80 = vmatprep.subr.mxu0 0.0
    %81 = vmatpush1.msra.mxu0 %v63
    %82 = vmatprep.subr.mxu0 0.0
    %83 = vmatpush1.msra.mxu0 %v64
    %84 = vmatprep.subr.mxu0 0.0
    %85 = vmatpush1.msra.mxu0 %v65
    %86 = vmatprep.subr.mxu0 0.0
    %87 = vmatpush1.msra.mxu0 %v66
    %88 = vmatprep.subr.mxu0 0.0
    %89 = vmatpush1.msra.mxu0 0.0
    %90 = vmatprep.subr.mxu0 0.0
    %91 = vmatpush1.msra.mxu0 0.0
    %92 = vmatprep.subr.mxu0 0.0
    %93 = vmatpush1.msra.mxu0 0.0
    %94 = vmatprep.subr.mxu0 0.0
    %95 = vmatpush1.msra.mxu0 0.0
    %96 = vmatprep.subr.mxu0 0.0
    %97 = vmatpush1.msra.mxu0 0.0
    %98 = vmatprep.subr.mxu0 0.0
    %99 = vmatpush1.msra.mxu0 0.0
    %100 = vmatprep.subr.mxu0 0.0
    %101 = vmatpush1.msra.mxu0 0.0
    %102 = vmatprep.subr.mxu0 0.0
    %103 = vmatpush1.msra.mxu0 0.0
    %104 = vmatprep.subr.mxu0 0.0
    %105 = vmatpush1.msra.mxu0 0.0
    %106 = vmatprep.subr.mxu0 0.0
    %107 = vmatpush1.msra.mxu0 0.0
    %108 = vmatprep.subr.mxu0 0.0
    %109 = vmatpush1.msra.mxu0 0.0
    %110 = vmatprep.subr.mxu0 0.0
    %111 = vmatpush1.msra.mxu0 0.0
    %112 = vmatprep.subr.mxu0 0.0
    %113 = vmatpush1.msra.mxu0 0.0
    %114 = vmatprep.subr.mxu0 0.0
    %115 = vmatpush1.msra.mxu0 0.0
    %116 = vmatprep.subr.mxu0 0.0
    %117 = vmatpush1.msra.mxu0 0.0
    %118 = vmatprep.subr.mxu0 0.0
    %119 = vmatpush1.msra.mxu0 0.0
    %120 = vmatprep.subr.mxu0 0.0
    %121 = vmatpush1.msra.mxu0 0.0
    %122 = vmatprep.subr.mxu0 0.0
    %123 = vmatpush1.msra.mxu0 0.0
    %124 = vmatprep.subr.mxu0 0.0
    %125 = vmatpush1.msra.mxu0 0.0
    %126 = vmatprep.subr.mxu0 0.0
    %127 = vmatpush1.msra.mxu0 0.0
    %128 = vmatprep.subr.mxu0 0.0
    %129 = vmatpush1.msra.mxu0 0.0
    %130 = vmatprep.subr.mxu0 0.0
    %131 = vmatpush1.msra.mxu0 0.0
    %132 = vmatprep.subr.mxu0 0.0
    %133 = vmatpush1.msra.mxu0 0.0
    %134 = vmatprep.subr.mxu0 0.0
    %135 = vmatpush1.msra.mxu0 0.0
    %136 = vmatprep.subr.mxu0 0.0
    %137 = vmatpush1.msra.mxu0 0.0
    %138 = vmatprep.subr.mxu0 0.0
    %139 = vmatpush1.msra.mxu0 0.0
    %140 = vmatprep.subr.mxu0 0.0
    %141 = vmatpush1.msra.mxu0 0.0
    %142 = vmatprep.subr.mxu0 0.0
    %143 = vmatpush1.msra.mxu0 0.0
    %144 = vmatprep.mubr.f32.mxu0 0.0
    %145 = vmatmul.mubr.f32.gmra.mrb[0].mxu0 %v69
    %v146 = vpop.f32.mrb[0].mxu0
    %v147 = vadd.f32 0.0, %v146
    %v148 = vpop.f32.mrb[0].mxu0
    %149 = vmatprep.mubr.f32.mxu0 0.0
    %150 = vmatmul.mubr.f32.gmra.mrb[0].mxu0 %v72
    %v151 = vpop.f32.mrb[0].mxu0
    %v152 = vadd.f32 0.0, %v151
    %v153 = vpop.f32.mrb[0].mxu0
    %154 = vmatprep.mubr.f32.mxu0 0.0
    %155 = vmatmul.mubr.f32.gmra.mrb[0].mxu0 %v75
    %v156 = vpop.f32.mrb[0].mxu0
    %v157 = vadd.f32 0.0, %v156
    %v158 = vpop.f32.mrb[0].mxu0
    %159 = vmatprep.mubr.f32.mxu0 0.0
    %160 = vmatmul.mubr.f32.gmra.mrb[0].mxu0 %v78
    %v161 = vpop.f32.mrb[0].mxu0
    %v162 = vadd.f32 0.0, %v161
    %v163 = vpop.f32.mrb[0].mxu0
    %164 = vdwg.mxu0
    %v165 = vld [vmem:[%s3] sm:$0x1]
    %v166 = vlaneseq
    %v167 = vand.u32 %v166, 127
    %vm168 = vcmp.lt.s32.totalorder %v167, 16
    %v169 = vld [vmem:[#allocation7] sm:$0xff]
    %v170 = vld [vmem:[#allocation7 + $0x8] sm:$0xff]
    %vm171 = vcmask 130048
    %v173 = vsel %vm171, %v169, 0
    %v176 = vsel %vm171, %v170, 0
    %178 = vmatprep.subr.mxu0 0.0
    %179 = vmatpush1.msra.mxu0 %v147
    %180 = vmatprep.subr.mxu0 0.0
    %181 = vmatpush1.msra.mxu0 %v152
    %182 = vmatprep.subr.mxu0 0.0
    %183 = vmatpush1.msra.mxu0 0.0
    %184 = vmatprep.subr.mxu0 0.0
    %185 = vmatpush1.msra.mxu0 0.0
    %186 = vmatprep.subr.mxu0 0.0
    %187 = vmatpush1.msra.mxu0 0.0
    %188 = vmatprep.subr.mxu0 0.0
    %189 = vmatpush1.msra.mxu0 0.0
    %190 = vmatprep.subr.mxu0 0.0
    %191 = vmatpush1.msra.mxu0 0.0
    %192 = vmatprep.subr.mxu0 0.0
    %193 = vmatpush1.msra.mxu0 0.0
    %194 = vmatprep.subr.mxu0 0.0
    %195 = vmatpush1.msra.mxu0 0.0
    %196 = vmatprep.subr.mxu0 0.0
    %197 = vmatpush1.msra.mxu0 0.0
    %198 = vmatprep.subr.mxu0 0.0
    %199 = vmatpush1.msra.mxu0 0.0
    %200 = vmatprep.subr.mxu0 0.0
    %201 = vmatpush1.msra.mxu0 0.0
    %202 = vmatprep.subr.mxu0 0.0
    %203 = vmatpush1.msra.mxu0 0.0
    %204 = vmatprep.subr.mxu0 0.0
    %205 = vmatpush1.msra.mxu0 0.0
    %206 = vmatprep.subr.mxu0 0.0
    %207 = vmatpush1.msra.mxu0 0.0
    %208 = vmatprep.subr.mxu0 0.0
    %209 = vmatpush1.msra.mxu0 0.0
    %210 = vmatprep.subr.mxu0 0.0
    %211 = vmatpush1.msra.mxu0 0.0
    %212 = vmatprep.subr.mxu0 0.0
    %213 = vmatpush1.msra.mxu0 0.0
    %214 = vmatprep.subr.mxu0 0.0
    %215 = vmatpush1.msra.mxu0 0.0
    %216 = vmatprep.subr.mxu0 0.0
    %217 = vmatpush1.msra.mxu0 0.0
    %218 = vmatprep.subr.mxu0 0.0
    %219 = vmatpush1.msra.mxu0 0.0
    %220 = vmatprep.subr.mxu0 0.0
    %221 = vmatpush1.msra.mxu0 0.0
    %222 = vmatprep.subr.mxu0 0.0
    %223 = vmatpush1.msra.mxu0 0.0
    %224 = vmatprep.subr.mxu0 0.0
    %225 = vmatpush1.msra.mxu0 0.0
    %226 = vmatprep.subr.mxu0 0.0
    %227 = vmatpush1.msra.mxu0 0.0
    %228 = vmatprep.subr.mxu0 0.0
    %229 = vmatpush1.msra.mxu0 0.0
    %230 = vmatprep.subr.mxu0 0.0
    %231 = vmatpush1.msra.mxu0 0.0
    %232 = vmatprep.subr.mxu0 0.0
    %233 = vmatpush1.msra.mxu0 0.0
    %234 = vmatprep.subr.mxu0 0.0
    %235 = vmatpush1.msra.mxu0 0.0
    %236 = vmatprep.subr.mxu0 0.0
    %237 = vmatpush1.msra.mxu0 0.0
    %238 = vmatprep.subr.mxu0 0.0
    %239 = vmatpush1.msra.mxu0 0.0
    %240 = vmatprep.subr.mxu0 0.0
    %241 = vmatpush1.msra.mxu0 0.0
    %242 = vmatprep.mubr.f32.mxu0 0.0
    %243 = vmatmul.mubr.f32.gmra.mrb[0].mxu0 %v173
    %v244 = vpop.f32.mrb[0].mxu0
    %v245 = vadd.f32 0.0, %v244
    %v246 = vpop.f32.mrb[0].mxu0
    %247 = vmatprep.mubr.f32.mxu0 0.0
    %248 = vmatmul.mubr.f32.gmra.mrb[0].mxu0 %v176
    %v249 = vpop.f32.mrb[0].mxu0
    %v250 = vadd.f32 0.0, %v249
    %v251 = vpop.f32.mrb[0].mxu0
    %252 = vdwg.mxu0
    %v253 = vsel %vm168, %v245, %v147
    %v254 = vsel %vm168, %v250, %v152
    %v256 = vlaneseq
    %v257 = vshrl.u32 %v256, 7
    %v258 = vsub.s32 0, %v257
    %v259 = vrot.slane %v165, %v258
    %v261 = vadd.f32 %v253, %v259
    %v262 = vadd.f32 %v254, %v259
    %v263 = vmax.f32 %v261, 0.0
    %v264 = vmax.f32 %v262, 0.0
    %265 = vst [vmem:[#allocation8] sm:$0xff] %v263
    %266 = vst [vmem:[#allocation8 + $0x8] sm:$0xff] %v264
    %v267 = vld [vmem:[#allocation7] sm:$0xff]
    %v268 = vld [vmem:[#allocation7 + $0x8] sm:$0xff]
    %v270 = vsel %vm171, %v267, 0
    %v273 = vsel %vm171, %v268, 0
    %275 = vmatprep.subr.mxu0 0.0
    %276 = vmatpush1.msra.mxu0 %v157
    %277 = vmatprep.subr.mxu0 0.0
    %278 = vmatpush1.msra.mxu0 %v162
    %279 = vmatprep.subr.mxu0 0.0
    %280 = vmatpush1.msra.mxu0 0.0
    %281 = vmatprep.subr.mxu0 0.0
    %282 = vmatpush1.msra.mxu0 0.0
    %283 = vmatprep.subr.mxu0 0.0
    %284 = vmatpush1.msra.mxu0 0.0
    %285 = vmatprep.subr.mxu0 0.0
    %286 = vmatpush1.msra.mxu0 0.0
    %287 = vmatprep.subr.mxu0 0.0
    %288 = vmatpush1.msra.mxu0 0.0
    %289 = vmatprep.subr.mxu0 0.0
    %290 = vmatpush1.msra.mxu0 0.0
    %291 = vmatprep.subr.mxu0 0.0
    %292 = vmatpush1.msra.mxu0 0.0
    %293 = vmatprep.subr.mxu0 0.0
    %294 = vmatpush1.msra.mxu0 0.0
    %295 = vmatprep.subr.mxu0 0.0
    %296 = vmatpush1.msra.mxu0 0.0
    %297 = vmatprep.subr.mxu0 0.0
    %298 = vmatpush1.msra.mxu0 0.0
    %299 = vmatprep.subr.mxu0 0.0
    %300 = vmatpush1.msra.mxu0 0.0
    %301 = vmatprep.subr.mxu0 0.0
    %302 = vmatpush1.msra.mxu0 0.0
    %303 = vmatprep.subr.mxu0 0.0
    %304 = vmatpush1.msra.mxu0 0.0
    %305 = vmatprep.subr.mxu0 0.0
    %306 = vmatpush1.msra.mxu0 0.0
    %307 = vmatprep.subr.mxu0 0.0
    %308 = vmatpush1.msra.mxu0 0.0
    %309 = vmatprep.subr.mxu0 0.0
    %310 = vmatpush1.msra.mxu0 0.0
    %311 = vmatprep.subr.mxu0 0.0
    %312 = vmatpush1.msra.mxu0 0.0
    %313 = vmatprep.subr.mxu0 0.0
    %314 = vmatpush1.msra.mxu0 0.0
    %315 = vmatprep.subr.mxu0 0.0
    %316 = vmatpush1.msra.mxu0 0.0
    %317 = vmatprep.subr.mxu0 0.0
    %318 = vmatpush1.msra.mxu0 0.0
    %319 = vmatprep.subr.mxu0 0.0
    %320 = vmatpush1.msra.mxu0 0.0
    %321 = vmatprep.subr.mxu0 0.0
    %322 = vmatpush1.msra.mxu0 0.0
    %323 = vmatprep.subr.mxu0 0.0
    %324 = vmatpush1.msra.mxu0 0.0
    %325 = vmatprep.subr.mxu0 0.0
    %326 = vmatpush1.msra.mxu0 0.0
    %327 = vmatprep.subr.mxu0 0.0
    %328 = vmatpush1.msra.mxu0 0.0
    %329 = vmatprep.subr.mxu0 0.0
    %330 = vmatpush1.msra.mxu0 0.0
    %331 = vmatprep.subr.mxu0 0.0
    %332 = vmatpush1.msra.mxu0 0.0
    %333 = vmatprep.subr.mxu0 0.0
    %334 = vmatpush1.msra.mxu0 0.0
    %335 = vmatprep.subr.mxu0 0.0
    %336 = vmatpush1.msra.mxu0 0.0
    %337 = vmatprep.subr.mxu0 0.0
    %338 = vmatpush1.msra.mxu0 0.0
    %339 = vmatprep.mubr.f32.mxu0 0.0
    %340 = vmatmul.mubr.f32.gmra.mrb[0].mxu0 %v270
    %v341 = vpop.f32.mrb[0].mxu0
    %v342 = vadd.f32 0.0, %v341
    %v343 = vpop.f32.mrb[0].mxu0
    %344 = vmatprep.mubr.f32.mxu0 0.0
    %345 = vmatmul.mubr.f32.gmra.mrb[0].mxu0 %v273
    %v346 = vpop.f32.mrb[0].mxu0
    %v347 = vadd.f32 0.0, %v346
    %v348 = vpop.f32.mrb[0].mxu0
    %349 = vdwg.mxu0
    %v350 = vsel %vm168, %v342, %v157
    %v351 = vsel %vm168, %v347, %v162
    %v352 = vadd.f32 %v350, %v259
    %v353 = vadd.f32 %v351, %v259
    %v354 = vmax.f32 %v352, 0.0
    %v355 = vmax.f32 %v353, 0.0
    %s356 = scalar_lea.vmem [#allocation8], 16
    %357 = vst [vmem:[%s356] sm:$0xff] %v354
    %358 = vst [vmem:[%s356 + $0x8] sm:$0xff] %v355
    // Predicated region
    $region30: #{gcn_layer_forward.1} parent=1 // pred_check
      _
    $region31: #{gcn_layer_forward.1} parent=1 // pred_check_branch
      %360 = sbr.rel (0) target = $region33
    $region32: #{gcn_layer_forward.1} parent=1 // pred_region
      %s362 = ssub.s32 512, 512
      %363 = vsyncadd [#allocation4], %s362
      %s364 = sshll.u32 [#allocation8], 4
      %s365 = int_to_ptr.vmem [resolvable:$true] %s364
      %370 = dma.vmem_to_hbm [thread:$0]  %s365, 512, %s4, [#allocation4], 128, 128, 8
    $region33: #{gcn_layer_forward.1} parent=1 // pred_fallthru
      _
    // Predicated region
    $region34: #{gcn_layer_forward.1} parent=1 // pred_check
      _
    $region35: #{gcn_layer_forward.1} parent=1 // pred_check_branch
      %372 = sbr.rel (0) target = $region37
    $region36: #{gcn_layer_forward.1} parent=1 // pred_region
      %373 = dma.done [#allocation4], 512
    $region37: #{gcn_layer_forward.1} parent=1 // pred_fallthru
      _
    %374 = vsyncpa [#allocation3], 1
    %375 = vsyncpa [#allocation6], 1
    %376 = vsyncpa [#allocation4], 1

</llo_original>
